<compile_context>
chip_gen: v6e
topology: v6e:2x2x1
jax: 0.10.0
libtpu: 0.0.40
codegen_flags: <defaults>
</compile_context>

<pallas_src>
import jax
import jax.numpy as jnp
from jax.experimental import pallas as pl
from jax.experimental.pallas import tpu as pltpu


def _round_up(n, m):
    return ((n + m - 1) // m) * m


def _encoder_kernel(x_ref, w1_ref, b1_ref, w2_ref, b2_ref, o_ref):
    # In-kernel f32 -> bf16 cast of the streamed activations (VPU, hidden under DMA).
    x = x_ref[...].astype(w1_ref.dtype)

    # Layer 1: Linear(input_dim -> hidden) + ReLU   (Dropout -> identity in eval)
    h1 = jnp.dot(x, w1_ref[...], preferred_element_type=jnp.float32)
    h1 = jnp.maximum(h1 + b1_ref[...], 0.0)

    # Layer 2: Linear(hidden -> latent) + ReLU
    h1 = h1.astype(w2_ref.dtype)            # bf16 feed to the MXU; accumulate in f32
    h2 = jnp.dot(h1, w2_ref[...], preferred_element_type=jnp.float32)
    o_ref[...] = jnp.maximum(h2 + b2_ref[...], 0.0).astype(o_ref.dtype)


def config_encoder(x, params, *, block_batch=8192, compute_dtype=jnp.bfloat16,
                   out_dtype=jnp.bfloat16, min_pallas_batch=512):
    """x: (B, input_dim) f32 -> (B, latent_dim) `out_dtype`."""
    w1, b1, w2, b2 = params
    B, D = x.shape
    H = w1.shape[1]
    L = w2.shape[1]

    # Tiny batches: a pallas_call launch + one padded tile is pure fixed overhead;
    # let XLA fuse the two small GEMMs instead.
    if B < min_pallas_batch:
        h = jnp.maximum(x @ w1 + b1, 0.0)
        h = jnp.maximum(h @ w2 + b2, 0.0)
        return h.astype(out_dtype)

    # Batch tile: big enough to amortize per-step pipeline overhead, capped so the
    # grid always has >= 2 steps (keeps both v7x TensorCores busy), multiple of 8.
    tb = min(block_batch, _round_up(pl.cdiv(B, 2), 8))
    grid = (pl.cdiv(B, tb),)   # ragged last tile handled by Pallas (masked writeback)

    return pl.pallas_call(
        _encoder_kernel,
        out_shape=jax.ShapeDtypeStruct((B, L), out_dtype),
        grid=grid,
        in_specs=[
            pl.BlockSpec((tb, D), lambda i: (i, 0)),   # streamed f32 activations
            pl.BlockSpec((D, H), lambda i: (0, 0)),    # resident bf16 weights
            pl.BlockSpec((1, H), lambda i: (0, 0)),    # resident f32 biases
            pl.BlockSpec((H, L), lambda i: (0, 0)),
            pl.BlockSpec((1, L), lambda i: (0, 0)),
        ],
        out_specs=pl.BlockSpec((tb, L), lambda i: (i, 0)),
        compiler_params=pltpu.CompilerParams(
            dimension_semantics=("parallel",),
            vmem_limit_bytes=48 * 1024 * 1024,
        ),
    )(x, w1.astype(compute_dtype), b1, w2.astype(compute_dtype), b2)


def init_params(key, input_dim, hidden_dim=128, latent_dim=64):
    """PyTorch nn.Linear-style init: U(-1/sqrt(fan_in), 1/sqrt(fan_in))."""
    ks = jax.random.split(key, 4)

    def lin(kw, kb, fan_in, fan_out):
        bound = 1.0 / jnp.sqrt(fan_in)
        w = jax.random.uniform(kw, (fan_in, fan_out), jnp.float32, -bound, bound)
        b = jax.random.uniform(kb, (1, fan_out), jnp.float32, -bound, bound)
        return w, b

    w1, b1 = lin(ks[0], ks[1], input_dim, hidden_dim)
    w2, b2 = lin(ks[2], ks[3], hidden_dim, latent_dim)
    return (w1, b1, w2, b2)


if __name__ == "__main__":
    # Module defaults: input_dimension=48, encoder_hidden_dim=128, latent_dimension=64.
    input_dim, hidden_dim, latent_dim = 48, 128, 64

    key = jax.random.PRNGKey(0)
    k_params, k_x1, k_x2 = jax.random.split(key, 3)
    params = init_params(k_params, input_dim, hidden_dim, latent_dim)
    w1, b1, w2, b2 = params

    def ref_fwd(xv):  # plain f32 reference (eval-mode dropout = identity)
        h = jnp.maximum(xv @ w1 + b1, 0.0)
        return jnp.maximum(h @ w2 + b2, 0.0)

    # 1) Small batch (not a multiple of 8), Pallas path forced:
    #    tb=8, grid=(2,), ragged last tile masked on writeback.
    x_small = jax.random.normal(k_x1, (10, input_dim), dtype=jnp.float32)
    out_small = jax.block_until_ready(
        config_encoder(x_small, params, min_pallas_batch=0))
    assert out_small.shape == (10, latent_dim)
    err = jnp.max(jnp.abs(out_small.astype(jnp.float32) - ref_fwd(x_small)))
    assert jnp.allclose(out_small.astype(jnp.float32), ref_fwd(x_small),
                        atol=5e-2, rtol=5e-2), float(err)

    # 2) Same small batch through the default dispatch (XLA fallback path).
    out_xla = jax.block_until_ready(config_encoder(x_small, params))
    assert jnp.allclose(out_xla.astype(jnp.float32), ref_fwd(x_small),
                        atol=5e-2, rtol=5e-2)

    # 3) Multi-step grid with a ragged last tile (B=2051 -> tb=1032, grid=(2,)).
    x_big = jax.random.normal(k_x2, (2051, input_dim), dtype=jnp.float32)
    out_big = jax.block_until_ready(config_encoder(x_big, params))
    assert out_big.shape == (2051, latent_dim)
    err = jnp.max(jnp.abs(out_big.astype(jnp.float32) - ref_fwd(x_big)))
    assert jnp.allclose(out_big.astype(jnp.float32), ref_fwd(x_big),
                        atol=5e-2, rtol=5e-2), float(err)

    print("KERNEL_OK")
</pallas_src>

<mosaic_0001>
module attributes {stable_mosaic.version = 11 : i64} {
  func.func @_encoder_kernel(%arg0: i32, %arg1: memref<8x48xf32, #tpu.memory_space<vmem>>, %arg2: memref<48x128xbf16, #tpu.memory_space<vmem>>, %arg3: memref<1x128xf32, #tpu.memory_space<vmem>>, %arg4: memref<128x64xbf16, #tpu.memory_space<vmem>>, %arg5: memref<1x64xf32, #tpu.memory_space<vmem>>, %arg6: memref<8x64xbf16, #tpu.memory_space<vmem>>) attributes {dimension_semantics = [#tpu.dimension_semantics<parallel>], iteration_bounds = array<i64: 2>, scalar_prefetch = 0 : i64, scratch_operands = 0 : i64, tpu.core_type = #tpu.core_type<tc>, window_params = [{transform_indices = @transform_0, window_bounds = array<i64: 8, 48>}, {pipeline_mode = #tpu.pipeline_mode<synchronous>, transform_indices = @transform_1, window_bounds = array<i64: 48, 128>}, {pipeline_mode = #tpu.pipeline_mode<synchronous>, transform_indices = @transform_2, window_bounds = array<i64: 1, 128>}, {pipeline_mode = #tpu.pipeline_mode<synchronous>, transform_indices = @transform_3, window_bounds = array<i64: 128, 64>}, {pipeline_mode = #tpu.pipeline_mode<synchronous>, transform_indices = @transform_4, window_bounds = array<i64: 1, 64>}, {transform_indices = @transform_5, window_bounds = array<i64: 8, 64>}]} {
    %c0 = arith.constant 0 : index
    %c0_0 = arith.constant 0 : index
    %0 = vector.load %arg1[%c0, %c0_0] : memref<8x48xf32, #tpu.memory_space<vmem>>, vector<8x48xf32>
    %1 = arith.truncf %0 : vector<8x48xf32> to vector<8x48xbf16>
    %c0_1 = arith.constant 0 : index
    %c0_2 = arith.constant 0 : index
    %2 = vector.load %arg2[%c0_1, %c0_2] : memref<48x128xbf16, #tpu.memory_space<vmem>>, vector<48x128xbf16>
    %cst = arith.constant dense<0.000000e+00> : vector<8x128xf32>
    %3 = tpu.matmul %1, %2, %cst {dimension_numbers = #tpu.dot_dimension_numbers<[1], [0], [0], [1], [0, 0, 1, 1], [], []>} : vector<8x48xbf16>, vector<48x128xbf16>, vector<8x128xf32> -> vector<8x128xf32>
    %c0_3 = arith.constant 0 : index
    %c0_4 = arith.constant 0 : index
    %4 = vector.load %arg3[%c0_3, %c0_4] : memref<1x128xf32, #tpu.memory_space<vmem>>, vector<1x128xf32>
    %5 = vector.broadcast %4 : vector<1x128xf32> to vector<8x128xf32>
    %6 = arith.addf %3, %5 : vector<8x128xf32>
    %cst_5 = arith.constant 0.000000e+00 : f32
    %7 = vector.broadcast %cst_5 : f32 to vector<8x128xf32>
    %8 = arith.maximumf %6, %7 : vector<8x128xf32>
    %9 = arith.truncf %8 : vector<8x128xf32> to vector<8x128xbf16>
    %c0_6 = arith.constant 0 : index
    %c0_7 = arith.constant 0 : index
    %10 = vector.load %arg4[%c0_6, %c0_7] : memref<128x64xbf16, #tpu.memory_space<vmem>>, vector<128x64xbf16>
    %cst_8 = arith.constant dense<0.000000e+00> : vector<8x64xf32>
    %11 = tpu.matmul %9, %10, %cst_8 {dimension_numbers = #tpu.dot_dimension_numbers<[1], [0], [0], [1], [0, 0, 1, 1], [], []>} : vector<8x128xbf16>, vector<128x64xbf16>, vector<8x64xf32> -> vector<8x64xf32>
    %c0_9 = arith.constant 0 : index
    %c0_10 = arith.constant 0 : index
    %12 = vector.load %arg5[%c0_9, %c0_10] : memref<1x64xf32, #tpu.memory_space<vmem>>, vector<1x64xf32>
    %13 = vector.broadcast %12 : vector<1x64xf32> to vector<8x64xf32>
    %14 = arith.addf %11, %13 : vector<8x64xf32>
    %cst_11 = arith.constant 0.000000e+00 : f32
    %15 = vector.broadcast %cst_11 : f32 to vector<8x64xf32>
    %16 = arith.maximumf %14, %15 : vector<8x64xf32>
    %17 = arith.truncf %16 : vector<8x64xf32> to vector<8x64xbf16>
    %c0_12 = arith.constant 0 : index
    %c0_13 = arith.constant 0 : index
    %18 = vector.load %arg6[%c0_12, %c0_13] : memref<8x64xbf16, #tpu.memory_space<vmem>>, vector<8x64xbf16>
    tpu.vector_store %arg6[%c0_12, %c0_13], %17 {strides = array<i32>} : memref<8x64xbf16, #tpu.memory_space<vmem>>, vector<8x64xbf16>,
    return
  }
  func.func @transform_0(%arg0: i32) -> (i32, i32) {
    %c0_i32 = arith.constant 0 : i32
    %c0_i32_0 = arith.constant 0 : i32
    return %arg0, %c0_i32 : i32, i32
  }
  func.func @transform_1(%arg0: i32) -> (i32, i32) {
    %c0_i32 = arith.constant 0 : i32
    %c0_i32_0 = arith.constant 0 : i32
    %c0_i32_1 = arith.constant 0 : i32
    return %c0_i32, %c0_i32_0 : i32, i32
  }
  func.func @transform_2(%arg0: i32) -> (i32, i32) {
    %c0_i32 = arith.constant 0 : i32
    %c0_i32_0 = arith.constant 0 : i32
    %c0_i32_1 = arith.constant 0 : i32
    return %c0_i32, %c0_i32_0 : i32, i32
  }
  func.func @transform_3(%arg0: i32) -> (i32, i32) {
    %c0_i32 = arith.constant 0 : i32
    %c0_i32_0 = arith.constant 0 : i32
    %c0_i32_1 = arith.constant 0 : i32
    return %c0_i32, %c0_i32_0 : i32, i32
  }
  func.func @transform_4(%arg0: i32) -> (i32, i32) {
    %c0_i32 = arith.constant 0 : i32
    %c0_i32_0 = arith.constant 0 : i32
    %c0_i32_1 = arith.constant 0 : i32
    return %c0_i32, %c0_i32_0 : i32, i32
  }
  func.func @transform_5(%arg0: i32) -> (i32, i32) {
    %c0_i32 = arith.constant 0 : i32
    %c0_i32_0 = arith.constant 0 : i32
    return %arg0, %c0_i32 : i32, i32
  }
}

</mosaic_0001>

<llo_original>
// kernel: tpu_custom_call.1
$region0: #{tpu_custom_call.1}
  #allocation0 [shape = 'u32[]', space=smem, size = 0x4, offset = 0x4, fixed_abs, tag = 'smem constant byte address 0x4 - core index']
  #allocation1 [shape = 'u32[144,128]{1,0:T(1,128)}', space=vmem, size = 0x12000, scoped, tag = 'internal scratch']
  %s0 = inlined_call_operand.vmem [shape: f32[10,48], index: 0, kind: input, shape index: {}]
  %s1 = inlined_call_operand.vmem [shape: bf16[48,128], index: 1, kind: input, shape index: {}]
  %s2 = inlined_call_operand.vmem [shape: f32[1,128], index: 2, kind: input, shape index: {}]
  %s3 = inlined_call_operand.vmem [shape: bf16[128,64], index: 3, kind: input, shape index: {}]
  %s4 = inlined_call_operand.vmem [shape: f32[1,64], index: 4, kind: input, shape index: {}]
  %s5 = inlined_call_operand.hbm [shape: bf16[10,64], index: 5, kind: output, shape index: {}]
  %s6 = sld [smem:[#allocation0]]
  $region53: #{tpu_custom_call.1} parent=0
    _
  %s8 = ssub.s32 1, %s6
  %s9 = scalar_select 0, %s8, %s6
  $region1: #{tpu_custom_call.1} parent=0
    #allocation2 [shape = 'u8[4096]{0}', space=vmem, size = 0x1000, scoped, tag = 'output window, operand 0']
    #allocation3 [shape = 's32[2]{0}', space=sflag, size = 0x8, scoped, tag = 'scoped memory for tpu_custom_call.1']
    %10 = vsyncpa [#allocation3], 0
    %s11 = scalar_lea.sflag [#allocation3], 1
    %12 = vsyncpa %s11, 0
    loop: start=0, step=1, limit=4
    $region2: #{tpu_custom_call.1} parent=1 // loop_pre_header
      _
    $region3: #{tpu_custom_call.1} parent=1 // loop_header
      %s14 = sphi 0, %s18
      %p15 = scmp.ge.s32.totalorder %s14, 4
      %s24 = sphi 0, %s26
      %s27 = sphi 0, %s24
      %s28 = sphi 0, %s27
      %s44 = sphi 0, %s28
      %s48 = sphi 0, %s48
      %s50 = sphi 0, %s48
      %s51 = sphi 0, %s50
      %s65 = sphi 0, %s51
      %s69 = sphi 0, %s69
      %s71 = sphi 0, %s69
      %s72 = sphi 0, %s71
      %s86 = sphi 0, %s72
      %s90 = sphi 0, %s90
      %s92 = sphi 0, %s90
      %s93 = sphi 0, %s92
      %s107 = sphi 0, %s93
      %s111 = sphi 0, %s111
      %s113 = sphi 0, %s111
      %s114 = sphi 0, %s113
      %s128 = sphi 0, %s114
      %s134 = sphi 0, %s136
      %s137 = sphi 0, %s134
      %s138 = sphi 0, %s137
      %s154 = sphi 0, %s138
    $region4: #{tpu_custom_call.1} parent=1 // loop_header_branch
      %17 = sbr.rel (%p15) target = $region8
    $region5: #{tpu_custom_call.1} parent=1 // loop_body
      %s19 = ssub.s32 %s14, 1
      %s20 = ssub.s32 %s14, 2
      %s21 = sadd.s32 %s14, 1
      %s22 = ssub.s32 %s14, %s21
      %p23 = scmp.eq.s32.totalorder %s22, 0
      %s25 = sadd.s32 %s24, 1
      %s26 = scalar_select %p23, %s24, %s25
      %p29 = pneg %p23
      %p30 = scmp.eq.s32.totalorder %s14, 1
      %p31 = por %p29, %p30
      %p32 = scmp.ne.s32.totalorder %s24, %s27
      %p33 = scmp.eq.s32.totalorder %s14, 0
      %p34 = por %p32, %p33
      %p35 = scmp.ne.s32.totalorder %s24, %s27
      %p36 = scmp.eq.s32.totalorder %s19, 1
      %p37 = por %p35, %p36
      %p38 = scmp.ne.s32.totalorder %s27, %s28
      %p39 = scmp.eq.s32.totalorder %s19, 0
      %p40 = por %p38, %p39
      %p41 = scmp.ne.s32.totalorder %s27, %s28
      %p42 = scmp.eq.s32.totalorder %s20, 1
      %p43 = por %p41, %p42
      %p45 = scmp.ne.s32.totalorder %s28, %s44
      %p46 = scmp.eq.s32.totalorder %s20, 0
      %p47 = por %p45, %p46
      %s49 = sadd.s32 %s48, 1
      %p52 = scmp.eq.s32.totalorder %s14, 1
      %p53 = scmp.ne.s32.totalorder %s48, %s50
      %p54 = scmp.eq.s32.totalorder %s14, 0
      %p55 = por %p53, %p54
      %p56 = scmp.ne.s32.totalorder %s48, %s50
      %p57 = scmp.eq.s32.totalorder %s19, 1
      %p58 = por %p56, %p57
      %p59 = scmp.ne.s32.totalorder %s50, %s51
      %p60 = scmp.eq.s32.totalorder %s19, 0
      %p61 = por %p59, %p60
      %p62 = scmp.ne.s32.totalorder %s50, %s51
      %p63 = scmp.eq.s32.totalorder %s20, 1
      %p64 = por %p62, %p63
      %p66 = scmp.ne.s32.totalorder %s51, %s65
      %p67 = scmp.eq.s32.totalorder %s20, 0
      %p68 = por %p66, %p67
      %s70 = sadd.s32 %s69, 1
      %p73 = scmp.eq.s32.totalorder %s14, 1
      %p74 = scmp.ne.s32.totalorder %s69, %s71
      %p75 = scmp.eq.s32.totalorder %s14, 0
      %p76 = por %p74, %p75
      %p77 = scmp.ne.s32.totalorder %s69, %s71
      %p78 = scmp.eq.s32.totalorder %s19, 1
      %p79 = por %p77, %p78
      %p80 = scmp.ne.s32.totalorder %s71, %s72
      %p81 = scmp.eq.s32.totalorder %s19, 0
      %p82 = por %p80, %p81
      %p83 = scmp.ne.s32.totalorder %s71, %s72
      %p84 = scmp.eq.s32.totalorder %s20, 1
      %p85 = por %p83, %p84
      %p87 = scmp.ne.s32.totalorder %s72, %s86
      %p88 = scmp.eq.s32.totalorder %s20, 0
      %p89 = por %p87, %p88
      %s91 = sadd.s32 %s90, 1
      %p94 = scmp.eq.s32.totalorder %s14, 1
      %p95 = scmp.ne.s32.totalorder %s90, %s92
      %p96 = scmp.eq.s32.totalorder %s14, 0
      %p97 = por %p95, %p96
      %p98 = scmp.ne.s32.totalorder %s90, %s92
      %p99 = scmp.eq.s32.totalorder %s19, 1
      %p100 = por %p98, %p99
      %p101 = scmp.ne.s32.totalorder %s92, %s93
      %p102 = scmp.eq.s32.totalorder %s19, 0
      %p103 = por %p101, %p102
      %p104 = scmp.ne.s32.totalorder %s92, %s93
      %p105 = scmp.eq.s32.totalorder %s20, 1
      %p106 = por %p104, %p105
      %p108 = scmp.ne.s32.totalorder %s93, %s107
      %p109 = scmp.eq.s32.totalorder %s20, 0
      %p110 = por %p108, %p109
      %s112 = sadd.s32 %s111, 1
      %p115 = scmp.eq.s32.totalorder %s14, 1
      %p116 = scmp.ne.s32.totalorder %s111, %s113
      %p117 = scmp.eq.s32.totalorder %s14, 0
      %p118 = por %p116, %p117
      %p119 = scmp.ne.s32.totalorder %s111, %s113
      %p120 = scmp.eq.s32.totalorder %s19, 1
      %p121 = por %p119, %p120
      %p122 = scmp.ne.s32.totalorder %s113, %s114
      %p123 = scmp.eq.s32.totalorder %s19, 0
      %p124 = por %p122, %p123
      %p125 = scmp.ne.s32.totalorder %s113, %s114
      %p126 = scmp.eq.s32.totalorder %s20, 1
      %p127 = por %p125, %p126
      %p129 = scmp.ne.s32.totalorder %s114, %s128
      %p130 = scmp.eq.s32.totalorder %s20, 0
      %p131 = por %p129, %p130
      %s132 = ssub.s32 %s14, %s21
      %p133 = scmp.eq.s32.totalorder %s132, 0
      %s135 = sadd.s32 %s134, 1
      %s136 = scalar_select %p133, %s134, %s135
      %p139 = pneg %p133
      %p140 = scmp.eq.s32.totalorder %s14, 1
      %p141 = por %p139, %p140
      %p142 = scmp.ne.s32.totalorder %s134, %s137
      %p143 = scmp.eq.s32.totalorder %s14, 0
      %p144 = por %p142, %p143
      %p145 = scmp.ne.s32.totalorder %s134, %s137
      %p146 = scmp.eq.s32.totalorder %s19, 1
      %p147 = por %p145, %p146
      %p148 = scmp.ne.s32.totalorder %s137, %s138
      %p149 = scmp.eq.s32.totalorder %s19, 0
      %p150 = por %p148, %p149
      %p151 = scmp.ne.s32.totalorder %s137, %s138
      %p152 = scmp.eq.s32.totalorder %s20, 1
      %p153 = por %p151, %p152
      %p155 = scmp.ne.s32.totalorder %s138, %s154
      %p156 = scmp.eq.s32.totalorder %s20, 0
      %p157 = por %p155, %p156
      %p158 = scmp.le.s32.totalorder 1, %s14
      %p159 = scmp.lt.s32.totalorder %s14, 3
      %p160 = pnand %p158, %p159
      %p161 = pneg %p160
      // Predicated region
      $region9: #{tpu_custom_call.1} parent=5 // pred_check
        _
      $region10: #{tpu_custom_call.1} parent=5 // pred_check_branch
        %163 = sbr.rel (%p160) target = $region12
      $region11: #{tpu_custom_call.1} parent=5 // pred_region
        %s164 = ssub.s32 %s14, 1
        // Predicated region
        $region13: #{tpu_custom_call.1} parent=11 // pred_check
          %p165 = pneg %p61
        $region14: #{tpu_custom_call.1} parent=11 // pred_check_branch
          %167 = sbr.rel (%p165) target = $region16
        $region15: #{tpu_custom_call.1} parent=11 // pred_region
          _
        $region16: #{tpu_custom_call.1} parent=11 // pred_fallthru
          _
        // Predicated region
        $region17: #{tpu_custom_call.1} parent=11 // pred_check
          %p168 = pneg %p82
        $region18: #{tpu_custom_call.1} parent=11 // pred_check_branch
          %170 = sbr.rel (%p168) target = $region20
        $region19: #{tpu_custom_call.1} parent=11 // pred_region
          _
        $region20: #{tpu_custom_call.1} parent=11 // pred_fallthru
          _
        // Predicated region
        $region21: #{tpu_custom_call.1} parent=11 // pred_check
          %p171 = pneg %p103
        $region22: #{tpu_custom_call.1} parent=11 // pred_check_branch
          %173 = sbr.rel (%p171) target = $region24
        $region23: #{tpu_custom_call.1} parent=11 // pred_region
          _
        $region24: #{tpu_custom_call.1} parent=11 // pred_fallthru
          _
        // Predicated region
        $region25: #{tpu_custom_call.1} parent=11 // pred_check
          %p174 = pneg %p124
        $region26: #{tpu_custom_call.1} parent=11 // pred_check_branch
          %176 = sbr.rel (%p174) target = $region28
        $region27: #{tpu_custom_call.1} parent=11 // pred_region
          _
        $region28: #{tpu_custom_call.1} parent=11 // pred_fallthru
          _
      $region12: #{tpu_custom_call.1} parent=5 // pred_fallthru
        _
      %p177 = scmp.lt.s32.totalorder %s14, 2
      // Predicated region
      $region29: #{tpu_custom_call.1} parent=5 // pred_check
        %p178 = pneg %p177
      $region30: #{tpu_custom_call.1} parent=5 // pred_check_branch
        %180 = sbr.rel (%p178) target = $region32
      $region31: #{tpu_custom_call.1} parent=5 // pred_region
        // Predicated region
        $region33: #{tpu_custom_call.1} parent=31 // pred_check
          %p181 = pneg %p34
        $region34: #{tpu_custom_call.1} parent=31 // pred_check_branch
          %183 = sbr.rel (%p181) target = $region36
        $region35: #{tpu_custom_call.1} parent=31 // pred_region
          %p184 = scmp.lt.s32.totalorder %s14, 1
          %s185 = scalar_select %p184, %s14, 1
          %s186 = smul.addr %s185, 8
          %s187 = scalar_lea.vmem %s0, %s186
        $region36: #{tpu_custom_call.1} parent=31 // pred_fallthru
          _
      $region32: #{tpu_custom_call.1} parent=5 // pred_fallthru
        _
      %p188 = scmp.le.s32.totalorder 1, %s14
      %p189 = scmp.lt.s32.totalorder %s14, 3
      %p190 = pnand %p188, %p189
      %p191 = pneg %p190
      // Predicated region
      $region37: #{tpu_custom_call.1} parent=5 // pred_check
        _
      $region38: #{tpu_custom_call.1} parent=5 // pred_check_branch
        %193 = sbr.rel (%p190) target = $region40
      $region39: #{tpu_custom_call.1} parent=5 // pred_region
        %s194 = ssub.s32 %s14, 1
        %p195 = scmp.lt.s32.totalorder %s19, 1
        %s196 = scalar_select %p195, %s19, 1
        %s197 = smul.addr %s196, 8
        %s198 = scalar_lea.vmem %s0, %s197
        %p199 = pneg %p40
        %p200 = pneg %p37
        %p201 = pneg %p61
        %p202 = pneg %p58
        %p203 = pneg %p82
        %p204 = pneg %p79
        %p205 = pneg %p103
        %p206 = pneg %p100
        %p207 = pneg %p124
        %p208 = pneg %p121
        %p209 = pneg %p150
        %p210 = pneg %p147
        %s211 = sand.u32 %s137, 1
        %s212 = scalar_lea.sflag [#allocation3], %s211
        %s213 = sand.u32 %s137, 1
        %s214 = smul.addr %s213, 4
        %s215 = scalar_lea.vmem [#allocation2], %s214
        %p216 = scmp.lt.s32.totalorder %s19, 1
        %s217 = scalar_select %p216, %s19, 1
        %s218 = smul.addr %s217, 8
        %s219 = scalar_lea.vmem %s0, %s218
        %v221 = vld [vmem:[%s219] sm:$0xff]
        %v222 = vpack.c.bf16 %v221, %v221
        %v223 = vld [vmem:[%s1] sm:$0xf]
        %v224 = vld [vmem:[%s1 + $0x4] sm:$0xf]
        %v225 = vld [vmem:[%s1 + $0x8] sm:$0xf]
        %v226 = vld [vmem:[%s1 + $0xc] sm:$0xf]
        %v227 = vld [vmem:[%s1 + $0x10] sm:$0xf]
        %v228 = vld [vmem:[%s1 + $0x14] sm:$0xf]
        %v229 = vld [vmem:[%s2] sm:$0x1]
        %v231 = vlaneseq
        %v232 = vshrl.u32 %v231, 7
        %v233 = vsub.s32 0, %v232
        %v234 = vrot.slane %v229, %v233
        %v242 = vunpack.c.l.b16 %v223
        %v243 = vunpack.c.l.b16 %v224
        %v244 = vunpack.c.l.b16 %v225
        %v245 = vunpack.c.l.b16 %v226
        %v246 = vunpack.c.l.b16 %v227
        %v247 = vunpack.c.l.b16 %v228
        %v248 = vpack.c.b16 %v243, %v242
        %v249 = vpack.c.b16 %v245, %v244
        %v250 = vpack.c.b16 %v247, %v246
        %vm254 = vcmask 392192
        %v256 = vsel %vm254, %v222, 0
        %258 = vmatprep.subr.bf16.mxu0 0
        %259 = vmatpush1.bf16.msra.mxu0 0
        %260 = vmatprep.subr.bf16.mxu0 0
        %261 = vmatpush1.bf16.msra.mxu0 0
        %262 = vmatprep.subr.bf16.mxu0 0
        %263 = vmatpush1.bf16.msra.mxu0 0
        %264 = vmatprep.subr.bf16.mxu0 0
        %265 = vmatpush1.bf16.msra.mxu0 0
        %266 = vmatprep.subr.bf16.mxu0 0
        %267 = vmatpush1.bf16.msra.mxu0 0
        %268 = vmatprep.subr.bf16.mxu0 0
        %269 = vmatpush1.bf16.msra.mxu0 %v250
        %270 = vmatprep.subr.bf16.mxu0 0
        %271 = vmatpush1.bf16.msra.mxu0 %v249
        %272 = vmatprep.subr.bf16.mxu0 0
        %273 = vmatpush1.bf16.msra.mxu0 %v248
        %274 = vmatprep.subr.bf16.mxu0 0
        %275 = vmatpush2.bf16.msra.mxu0 0
        %276 = vmatprep.subr.bf16.mxu0 0
        %277 = vmatpush2.bf16.msra.mxu0 0
        %278 = vmatprep.subr.bf16.mxu0 0
        %279 = vmatpush2.bf16.msra.mxu0 0
        %280 = vmatprep.subr.bf16.mxu0 0
        %281 = vmatpush2.bf16.msra.mxu0 0
        %282 = vmatprep.subr.bf16.mxu0 0
        %283 = vmatpush2.bf16.msra.mxu0 0
        %284 = vmatprep.subr.bf16.mxu0 0
        %285 = vmatpush2.bf16.msra.mxu0 0
        %286 = vmatprep.subr.bf16.mxu0 0
        %287 = vmatpush2.bf16.msra.mxu0 0
        %288 = vmatprep.subr.bf16.mxu0 0
        %289 = vmatpush2.bf16.msra.mxu0 0
        %290 = vmatprep.mubr.bf16.mxu0 0
        %291 = vmatmul.mubr.bf16.gmra.mxu0 %v256
        %v292 = vpop.f32.mrf.mxu0
        %v293 = vadd.f32 %v234, %v292
        %v294 = vpop.f32.mrf.mxu0
        %v295 = vpop.f32.mrf.mxu0
        %v296 = vpop.f32.mrf.mxu0
        %297 = vdwg.mxu0
        %v298 = vmax.f32 %v293, 0.0
        %v299 = vpack.c.bf16 %v298, %v298
        %v300 = vld [vmem:[%s3] sm:$0xf]
        %v301 = vld [vmem:[%s3 + $0x4] sm:$0xf]
        %v302 = vld [vmem:[%s3 + $0x8] sm:$0xf]
        %v303 = vld [vmem:[%s3 + $0xc] sm:$0xf]
        %v304 = vld [vmem:[%s3 + $0x10] sm:$0xf]
        %v305 = vld [vmem:[%s3 + $0x14] sm:$0xf]
        %v306 = vld [vmem:[%s3 + $0x18] sm:$0xf]
        %v307 = vld [vmem:[%s3 + $0x1c] sm:$0xf]
        %v308 = vld [vmem:[%s3 + $0x20] sm:$0xf]
        %v309 = vld [vmem:[%s3 + $0x24] sm:$0xf]
        %v310 = vld [vmem:[%s3 + $0x28] sm:$0xf]
        %v311 = vld [vmem:[%s3 + $0x2c] sm:$0xf]
        %v312 = vld [vmem:[%s3 + $0x30] sm:$0xf]
        %v313 = vld [vmem:[%s3 + $0x34] sm:$0xf]
        %v314 = vld [vmem:[%s3 + $0x38] sm:$0xf]
        %v315 = vld [vmem:[%s3 + $0x3c] sm:$0xf]
        %v316 = vld [vmem:[%s4] sm:$0x1]
        %v318 = vlaneseq
        %v319 = vshrl.u32 %v318, 7
        %v320 = vsub.s32 0, %v319
        %v321 = vrot.slane %v316, %v320
        %v339 = vunpack.c.l.b16 %v300
        %v340 = vunpack.c.l.b16 %v301
        %v341 = vunpack.c.l.b16 %v302
        %v342 = vunpack.c.l.b16 %v303
        %v343 = vunpack.c.l.b16 %v304
        %v344 = vunpack.c.l.b16 %v305
        %v345 = vunpack.c.l.b16 %v306
        %v346 = vunpack.c.l.b16 %v307
        %v347 = vunpack.c.l.b16 %v308
        %v348 = vunpack.c.l.b16 %v309
        %v349 = vunpack.c.l.b16 %v310
        %v350 = vunpack.c.l.b16 %v311
        %v351 = vunpack.c.l.b16 %v312
        %v352 = vunpack.c.l.b16 %v313
        %v353 = vunpack.c.l.b16 %v314
        %v354 = vunpack.c.l.b16 %v315
        %v355 = vpack.c.b16 %v340, %v339
        %v356 = vpack.c.b16 %v342, %v341
        %v357 = vpack.c.b16 %v344, %v343
        %v358 = vpack.c.b16 %v346, %v345
        %v359 = vpack.c.b16 %v348, %v347
        %v360 = vpack.c.b16 %v350, %v349
        %v361 = vpack.c.b16 %v352, %v351
        %v362 = vpack.c.b16 %v354, %v353
        %371 = vmatprep.subr.bf16.mxu0 0
        %372 = vmatpush1.bf16.msra.mxu0 %v362
        %373 = vmatprep.subr.bf16.mxu0 0
        %374 = vmatpush1.bf16.msra.mxu0 %v361
        %375 = vmatprep.subr.bf16.mxu0 0
        %376 = vmatpush1.bf16.msra.mxu0 %v360
        %377 = vmatprep.subr.bf16.mxu0 0
        %378 = vmatpush1.bf16.msra.mxu0 %v359
        %379 = vmatprep.subr.bf16.mxu0 0
        %380 = vmatpush1.bf16.msra.mxu0 %v358
        %381 = vmatprep.subr.bf16.mxu0 0
        %382 = vmatpush1.bf16.msra.mxu0 %v357
        %383 = vmatprep.subr.bf16.mxu0 0
        %384 = vmatpush1.bf16.msra.mxu0 %v356
        %385 = vmatprep.subr.bf16.mxu0 0
        %386 = vmatpush1.bf16.msra.mxu0 %v355
        %387 = vmatprep.subr.bf16.mxu0 0
        %388 = vmatpush2.bf16.msra.mxu0 0
        %389 = vmatprep.subr.bf16.mxu0 0
        %390 = vmatpush2.bf16.msra.mxu0 0
        %391 = vmatprep.subr.bf16.mxu0 0
        %392 = vmatpush2.bf16.msra.mxu0 0
        %393 = vmatprep.subr.bf16.mxu0 0
        %394 = vmatpush2.bf16.msra.mxu0 0
        %395 = vmatprep.subr.bf16.mxu0 0
        %396 = vmatpush2.bf16.msra.mxu0 0
        %397 = vmatprep.subr.bf16.mxu0 0
        %398 = vmatpush2.bf16.msra.mxu0 0
        %399 = vmatprep.subr.bf16.mxu0 0
        %400 = vmatpush2.bf16.msra.mxu0 0
        %401 = vmatprep.subr.bf16.mxu0 0
        %402 = vmatpush2.bf16.msra.mxu0 0
        %403 = vmatprep.mubr.bf16.mxu0 0
        %404 = vmatmul.mubr.bf16.gmra.mxu0 %v299
        %v405 = vpop.f32.mrf.mxu0
        %v406 = vadd.f32 %v321, %v405
        %v407 = vpop.f32.mrf.mxu0
        %v408 = vpop.f32.mrf.mxu0
        %v409 = vpop.f32.mrf.mxu0
        %410 = vdwg.mxu0
        %v411 = vmax.f32 %v406, 0.0
        %v412 = vpack.c.bf16 %v411, %v411
        %vm413 = vcmask 519168
        %414 = vst.msk [vmem:[%s215] sm:$0xf] %vm413, %v412
        %s415 = sand.u32 %s137, 1
        %s416 = scalar_lea.sflag [#allocation3], %s415
        %s417 = sand.u32 %s137, 1
        %s418 = smul.addr %s417, 4
        %s419 = scalar_lea.vmem [#allocation2], %s418
        // Predicated region
        $region41: #{tpu_custom_call.1} parent=39 // pred_check
          %p420 = pneg %p147
        $region42: #{tpu_custom_call.1} parent=39 // pred_check_branch
          %422 = sbr.rel (%p420) target = $region44
        $region43: #{tpu_custom_call.1} parent=39 // pred_region
          %s424 = ssub.s32 64, 64
          %425 = vsyncadd %s416, %s424
          %s426 = smul.addr %s19, 64
          %s427 = scalar_lea.hbm %s5, %s426
          %s429 = sshll.u32 %s419, 4
          %s430 = int_to_ptr.vmem [resolvable:$true] %s429
          %432 = dma.vmem_to_hbm [thread:$0]  %s430, 64, %s427, %s416
        $region44: #{tpu_custom_call.1} parent=39 // pred_fallthru
          _
      $region40: #{tpu_custom_call.1} parent=5 // pred_fallthru
        _
      %p433 = scmp.le.s32.totalorder 2, %s14
      // Predicated region
      $region45: #{tpu_custom_call.1} parent=5 // pred_check
        %p434 = pneg %p433
      $region46: #{tpu_custom_call.1} parent=5 // pred_check_branch
        %436 = sbr.rel (%p434) target = $region48
      $region47: #{tpu_custom_call.1} parent=5 // pred_region
        %s437 = ssub.s32 %s14, 2
        // Predicated region
        $region49: #{tpu_custom_call.1} parent=47 // pred_check
          %p438 = pneg %p153
        $region50: #{tpu_custom_call.1} parent=47 // pred_check_branch
          %440 = sbr.rel (%p438) target = $region52
        $region51: #{tpu_custom_call.1} parent=47 // pred_region
          %s441 = sand.u32 %s138, 1
          %s442 = scalar_lea.sflag [#allocation3], %s441
          %s443 = sand.u32 %s138, 1
          %s444 = smul.addr %s443, 4
          %s445 = scalar_lea.vmem [#allocation2], %s444
          %446 = dma.done %s442, 64
        $region52: #{tpu_custom_call.1} parent=47 // pred_fallthru
          _
      $region48: #{tpu_custom_call.1} parent=5 // pred_fallthru
        _
    $region6: #{tpu_custom_call.1} parent=1 // loop_footer
      %s18 = sadd.s32 1, %s14
    $region7: #{tpu_custom_call.1} parent=1 // loop_footer_branch
      %13 = sbr.rel target = $region3
    $region8: #{tpu_custom_call.1} parent=1 // loop_exit
      _
    %447 = vsyncpa [#allocation3], 1
    %s448 = scalar_lea.sflag [#allocation3], 1
    %449 = vsyncpa %s448, 1

</llo_original>
